<compile_context>
chip_gen: v5e
topology: v5e:2x2
jax: 0.10.0
libtpu: 0.0.40
codegen_flags: <defaults>
</compile_context>

<pallas_src>
import functools

import jax
import jax.numpy as jnp
from jax.experimental import pallas as pl
from jax.experimental.pallas import tpu as pltpu

CE_WEIGHT = 0.5
DICE_WEIGHT = 2.0
SMOOTH = 1e-6


def _loss_stats_kernel(logits_ref, tgt_ref,
                       inter_ref, psum_ref, cnt_ref, ce_ref,
                       *, n_valid, tile, n_inner, needs_mask, approx):
    # grid = (B, outer_chunk, inner_reduction); axis 2 is the accumulation axis.
    o = pl.program_id(1)
    i = pl.program_id(2)

    @pl.when(i == 0)
    def _():
        inter_ref[...] = jnp.zeros_like(inter_ref)
        psum_ref[...] = jnp.zeros_like(psum_ref)
        cnt_ref[...] = jnp.zeros_like(cnt_ref)
        ce_ref[...] = jnp.zeros_like(ce_ref)

    logits = logits_ref[0].astype(jnp.float32)     # (C, T)  sublane=class, lane=pos
    tgt = tgt_ref[0].astype(jnp.int32)             # (1, T)  int8/uint8/int32 widened
    C, T = logits.shape

    # softmax over the class (sublane) axis; one reciprocal per lane
    m = jnp.max(logits, axis=0, keepdims=True)              # (1, T)
    ex = jnp.exp(logits - m)                                 # (C, T)
    denom = jnp.sum(ex, axis=0, keepdims=True)               # (1, T)
    inv = pl.reciprocal(denom, approx=approx)                # EUP vrcp when approx
    probs = ex * inv                                         # (C, T)

    # per-position cross-entropy pieces: logsumexp(logits) - logit[target]
    lse = m + jnp.log(denom)                                 # (1, T)

    if needs_mask:
        # Only the ragged final tile (and any duplicated tile from the outer split)
        # has lanes past N; for all other steps `limit >= T` and the selects are
        # all-true.  In-kernel masking replaces the wrapper-side jnp.pad HBM copy.
        start = (o * n_inner + i) * tile
        lane = jax.lax.broadcasted_iota(jnp.int32, (1, T), 1)
        valid = lane < (n_valid - start)                     # (1, T) bool
        probs = jnp.where(valid, probs, 0.0)                 # NaN-safe (select)
        tgt = jnp.where(valid, tgt, -1)

    cls = jax.lax.broadcasted_iota(jnp.int32, (C, T), 0)
    onehot = (cls == tgt).astype(jnp.float32)                # (C, T); 0 on masked lanes

    tgt_logit = jnp.sum(logits * onehot, axis=0, keepdims=True)   # (1, T)
    ce_elem = lse - tgt_logit                                      # (1, T)
    if needs_mask:
        ce_elem = jnp.where(valid, ce_elem, 0.0)

    # per-step cross-lane reductions into the tiny resident output blocks
    inter_ref[0] += jnp.sum(probs * onehot, axis=1, keepdims=True)   # (C, 1)
    psum_ref[0] += jnp.sum(probs, axis=1, keepdims=True)             # (C, 1)
    cnt_ref[0] += jnp.sum(onehot, axis=1, keepdims=True)             # (C, 1)
    ce_ref[0] += jnp.sum(ce_elem, axis=1, keepdims=True)             # (1, 1)


def _round_up(x, m):
    return (x + m - 1) // m * m


def _tpu_vmem_bytes():
    try:
        return int(pltpu.get_tpu_info().vmem_capacity_bytes)
    except Exception:
        return 64 * 1024 * 1024   # conservative fallback (v7x per-TC VMEM)


def _pick_tile(N, C, logit_itemsize, tgt_itemsize, vmem_budget):
    """Largest multiple-of-128 spatial tile such that the double-buffered input
    blocks plus the f32 elementwise intermediates fit the generation-aware VMEM
    budget; the per-intermediate footprint is additionally bounded (~2 MiB) so the
    Mosaic unroll / spill pressure stays manageable (64K lanes for C<=8)."""
    c_pad = max(8, _round_up(C, 8))
    per_lane = 2 * (C * logit_itemsize + tgt_itemsize) + 6 * c_pad * 4
    tile = (vmem_budget // per_lane) // 128 * 128
    cap = (2 * 1024 * 1024 // (c_pad * 4)) // 128 * 128
    tile = int(max(128, min(tile, cap)))
    n128 = int(pl.cdiv(N, 128)) * 128
    return min(tile, n128)


def combined_loss(logits, targets, *, tile=None, approx_recip=True):
    """logits: (B, C, D, H, W) float32/bfloat16 ; targets: (B, 1, D, H, W) int."""
    B, C = logits.shape[0], logits.shape[1]
    N = 1
    for s in logits.shape[2:]:
        N *= s

    # Free reshapes only (contiguous dim collapse): no HBM copies in the wrapper.
    logits_f = logits.reshape(B, C, N)
    tgt = targets.reshape(B, 1, N)
    if tgt.dtype.name not in ("int8", "uint8", "int32"):
        tgt = tgt.astype(jnp.int32)      # e.g. int64/int16 inputs

    vmem_cap = _tpu_vmem_bytes()
    vmem_limit = min(vmem_cap * 3 // 4, 96 * 1024 * 1024)    # ~48 MiB v7x, 96 MiB v5e/v6e
    if tile is None:
        pick_budget = min(vmem_cap // 3, 44 * 1024 * 1024)
        tile = _pick_tile(N, C, logits_f.dtype.itemsize, tgt.dtype.itemsize, pick_budget)
    assert tile % 128 == 0

    nt = int(pl.cdiv(N, tile))           # spatial tiles (last one may be ragged)

    # 2-way outer split whenever B == 1 so both v7x TensorCores get work; no parity
    # requirement on nt — the clamped index_map re-fetches the last real tile for the
    # duplicated step and the kernel masks it to zero contribution.
    no = 2 if (B == 1 and nt >= 2) else 1
    n_inner = int(pl.cdiv(nt, no))

    needs_mask = (no * n_inner * tile) != N

    if no * n_inner == nt:
        def spatial_idx(o, i):
            return o * n_inner + i
    else:
        def spatial_idx(o, i):
            return jnp.minimum(o * n_inner + i, nt - 1)

    kernel = functools.partial(
        _loss_stats_kernel, n_valid=N, tile=tile, n_inner=n_inner,
        needs_mask=needs_mask, approx=approx_recip)

    out_shapes = (
        jax.ShapeDtypeStruct((B * no, C, 1), jnp.float32),   # intersection sum(p*1hot)
        jax.ShapeDtypeStruct((B * no, C, 1), jnp.float32),   # sum of probs
        jax.ShapeDtypeStruct((B * no, C, 1), jnp.float32),   # target counts sum(1hot)
        jax.ShapeDtypeStruct((B * no, 1, 1), jnp.float32),   # cross-entropy sum
    )
    stat_spec = pl.BlockSpec((1, C, 1), lambda b, o, i: (b * no + o, 0, 0))
    ce_spec = pl.BlockSpec((1, 1, 1), lambda b, o, i: (b * no + o, 0, 0))

    inter, psum, cnt, ce_sum = pl.pallas_call(
        kernel,
        out_shape=out_shapes,
        grid_spec=pltpu.PrefetchScalarGridSpec(
            num_scalar_prefetch=0,
            grid=(B, no, n_inner),
            in_specs=[
                pl.BlockSpec((1, C, tile), lambda b, o, i: (b, 0, spatial_idx(o, i))),
                pl.BlockSpec((1, 1, tile), lambda b, o, i: (b, 0, spatial_idx(o, i))),
            ],
            out_specs=[stat_spec, stat_spec, stat_spec, ce_spec],
        ),
        compiler_params=pltpu.CompilerParams(
            dimension_semantics=("parallel", "parallel", "arbitrary"),
            vmem_limit_bytes=int(vmem_limit),
        ),
    )(logits_f, tgt)

    inter = inter[:, :, 0].reshape(B, no, C).sum(axis=1)     # (B, C)
    psum = psum[:, :, 0].reshape(B, no, C).sum(axis=1)       # (B, C)
    cnt = cnt[:, :, 0].reshape(B, no, C).sum(axis=1)         # (B, C)
    ce_total = jnp.sum(ce_sum)

    union = psum + cnt
    dice_scores = (2.0 * inter + SMOOTH) / (union + SMOOTH)
    dice = jnp.sum(dice_scores) / (C * B)
    valid_classes = (cnt > 0).astype(jnp.float32)
    dice_loss = 1.0 - jnp.sum(dice_scores * valid_classes) / (jnp.sum(valid_classes) + 1e-8)

    ce_loss = ce_total / (B * N)     # CrossEntropyLoss(mean) over B*D*H*W voxels

    total = CE_WEIGHT * ce_loss + DICE_WEIGHT * dice_loss
    # CombinedLoss.forward ('micro') returns (combined_loss, dice_et, dice_tc, dice_wt)
    # with the three dice values identical.
    return total, dice, dice, dice


def _reference(logits, targets):
    """Pure-JAX reference replicating the PyTorch semantics (micro reduction)."""
    B, C = logits.shape[0], logits.shape[1]
    tgt = targets.squeeze(1).astype(jnp.int32)                   # (B, D, H, W)
    onehot = jax.nn.one_hot(tgt, C, axis=1, dtype=jnp.float32)   # (B, C, D, H, W)
    logp = jax.nn.log_softmax(logits, axis=1)
    ce = -jnp.mean(jnp.sum(logp * onehot, axis=1))
    probs = jax.nn.softmax(logits, axis=1)
    inter = jnp.sum(probs * onehot, axis=(2, 3, 4))
    union = jnp.sum(probs + onehot, axis=(2, 3, 4))
    ds = (2.0 * inter + SMOOTH) / (union + SMOOTH)
    dice = jnp.sum(ds) / (C * B)
    valid = (jnp.sum(onehot, axis=(2, 3, 4)) > 0).astype(jnp.float32)
    dl = 1.0 - jnp.sum(ds * valid) / (jnp.sum(valid) + 1e-8)
    return CE_WEIGHT * ce + DICE_WEIGHT * dl, dice


if __name__ == "__main__":
    key = jax.random.PRNGKey(0)

    def _check(logits, targets, *, tile=None, approx=False, atol=1e-5, rtol=1e-5, name=""):
        out = combined_loss(logits, targets, tile=tile, approx_recip=approx)
        total, d_et, d_tc, d_wt = jax.block_until_ready(out)
        ref_total, ref_dice = _reference(logits.astype(jnp.float32), targets)
        assert jnp.allclose(total, ref_total, rtol=rtol, atol=atol), (name, total, ref_total)
        assert jnp.allclose(d_et, ref_dice, rtol=rtol, atol=atol), (name, d_et, ref_dice)

    # 1) baseline: auto tile, f32 logits, int32 targets, exact reciprocal
    k1, k2 = jax.random.split(jax.random.fold_in(key, 0))
    logits = jax.random.normal(k1, (2, 4, 4, 8, 8), dtype=jnp.float32)          # N = 256
    targets = jax.random.randint(k2, (2, 1, 4, 8, 8), 0, 4, dtype=jnp.int32)
    _check(logits, targets, name="f32_auto")

    # 2) ragged spatial extent (N = 105) + odd class count -> in-kernel lane masking
    k1, k2 = jax.random.split(jax.random.fold_in(key, 1))
    logits = jax.random.normal(k1, (1, 3, 3, 5, 7), dtype=jnp.float32)
    targets = jax.random.randint(k2, (1, 1, 3, 5, 7), 0, 3, dtype=jnp.int32)
    _check(logits, targets, name="ragged")

    # 3) B = 1, explicit small tile, even tile count -> 2-way outer split, no masking
    k1, k2 = jax.random.split(jax.random.fold_in(key, 2))
    logits = jax.random.normal(k1, (1, 4, 2, 16, 16), dtype=jnp.float32)         # N = 512
    targets = jax.random.randint(k2, (1, 1, 2, 16, 16), 0, 4, dtype=jnp.int32)
    _check(logits, targets, tile=128, name="split_even")

    # 4) B = 1, odd tile count -> clamped duplicate tile, fully masked inside kernel
    k1, k2 = jax.random.split(jax.random.fold_in(key, 3))
    logits = jax.random.normal(k1, (1, 4, 2, 16, 20), dtype=jnp.float32)         # N = 640
    targets = jax.random.randint(k2, (1, 1, 2, 16, 20), 0, 4, dtype=jnp.int32)
    _check(logits, targets, tile=128, name="split_odd")

    # 5) bf16 logits streamed without a wrapper-side f32 upcast
    k1, k2 = jax.random.split(jax.random.fold_in(key, 4))
    logits = jax.random.normal(k1, (2, 4, 4, 8, 8), dtype=jnp.bfloat16)
    targets = jax.random.randint(k2, (2, 1, 4, 8, 8), 0, 4, dtype=jnp.int32)
    _check(logits, targets, atol=1e-4, rtol=1e-4, name="bf16")

    # 6) int8 targets streamed directly (no int32 upcast copy in HBM)
    k1, k2 = jax.random.split(jax.random.fold_in(key, 5))
    logits = jax.random.normal(k1, (2, 4, 4, 8, 8), dtype=jnp.float32)
    targets = jax.random.randint(k2, (2, 1, 4, 8, 8), 0, 4, dtype=jnp.int32).astype(jnp.int8)
    _check(logits, targets, name="int8_targets")

    # 7) default approx (EUP) reciprocal -> looser tolerance
    k1, k2 = jax.random.split(jax.random.fold_in(key, 6))
    logits = jax.random.normal(k1, (2, 4, 4, 8, 8), dtype=jnp.float32)
    targets = jax.random.randint(k2, (2, 1, 4, 8, 8), 0, 4, dtype=jnp.int32)
    _check(logits, targets, approx=True, atol=2e-2, rtol=2e-2, name="approx_recip")

    # 8) larger ragged volume -> auto-picked 64K-lane tile, B==1 split + masking
    k1, k2 = jax.random.split(jax.random.fold_in(key, 7))
    logits = jax.random.normal(k1, (1, 4, 7, 100, 100), dtype=jnp.float32)       # N = 70000
    targets = jax.random.randint(k2, (1, 1, 7, 100, 100), 0, 4, dtype=jnp.int32)
    _check(logits, targets, atol=5e-4, rtol=5e-4, name="big_tile")

    print("KERNEL_OK")
</pallas_src>

<mosaic_0001>
module attributes {stable_mosaic.version = 11 : i64} {
  func.func @_loss_stats_kernel(%arg0: i32, %arg1: i32, %arg2: i32, %arg3: memref<1x4x256xf32, #tpu.memory_space<vmem>>, %arg4: memref<1x1x256xi32, #tpu.memory_space<vmem>>, %arg5: memref<1x4x1xf32, #tpu.memory_space<vmem>>, %arg6: memref<1x4x1xf32, #tpu.memory_space<vmem>>, %arg7: memref<1x4x1xf32, #tpu.memory_space<vmem>>, %arg8: memref<1x1x1xf32, #tpu.memory_space<vmem>>) attributes {dimension_semantics = [#tpu.dimension_semantics<parallel>, #tpu.dimension_semantics<parallel>, #tpu.dimension_semantics<arbitrary>], iteration_bounds = array<i64: 2, 1, 1>, scalar_prefetch = 0 : i64, scratch_operands = 0 : i64, tpu.core_type = #tpu.core_type<tc>, window_params = [{transform_indices = @transform_0, window_bounds = array<i64: 1, 4, 256>}, {transform_indices = @transform_1, window_bounds = array<i64: 1, 1, 256>}, {transform_indices = @transform_2, window_bounds = array<i64: 1, 4, 1>}, {transform_indices = @transform_3, window_bounds = array<i64: 1, 4, 1>}, {transform_indices = @transform_4, window_bounds = array<i64: 1, 4, 1>}, {transform_indices = @transform_5, window_bounds = array<i64: 1, 1, 1>}]} {
    %c0_i32 = arith.constant 0 : i32
    %0 = arith.cmpi eq, %arg2, %c0_i32 : i32
    %1 = arith.extui %0 : i1 to i32
    %c0_i32_0 = arith.constant 0 : i32
    %2 = arith.cmpi ne, %1, %c0_i32_0 : i32
    scf.if %2 {
      %cst_36 = arith.constant 0.000000e+00 : f32
      %61 = vector.broadcast %cst_36 : f32 to vector<1x4x1xf32>
      %c0_37 = arith.constant 0 : index
      %c0_38 = arith.constant 0 : index
      %c0_39 = arith.constant 0 : index
      %62 = vector.load %arg5[%c0_37, %c0_38, %c0_39] : memref<1x4x1xf32, #tpu.memory_space<vmem>>, vector<1x4x1xf32>
      tpu.vector_store %arg5[%c0_37, %c0_38, %c0_39], %61 {strides = array<i32>} : memref<1x4x1xf32, #tpu.memory_space<vmem>>, vector<1x4x1xf32>,
      %cst_40 = arith.constant 0.000000e+00 : f32
      %63 = vector.broadcast %cst_40 : f32 to vector<1x4x1xf32>
      %c0_41 = arith.constant 0 : index
      %c0_42 = arith.constant 0 : index
      %c0_43 = arith.constant 0 : index
      %64 = vector.load %arg6[%c0_41, %c0_42, %c0_43] : memref<1x4x1xf32, #tpu.memory_space<vmem>>, vector<1x4x1xf32>
      tpu.vector_store %arg6[%c0_41, %c0_42, %c0_43], %63 {strides = array<i32>} : memref<1x4x1xf32, #tpu.memory_space<vmem>>, vector<1x4x1xf32>,
      %cst_44 = arith.constant 0.000000e+00 : f32
      %65 = vector.broadcast %cst_44 : f32 to vector<1x4x1xf32>
      %c0_45 = arith.constant 0 : index
      %c0_46 = arith.constant 0 : index
      %c0_47 = arith.constant 0 : index
      %66 = vector.load %arg7[%c0_45, %c0_46, %c0_47] : memref<1x4x1xf32, #tpu.memory_space<vmem>>, vector<1x4x1xf32>
      tpu.vector_store %arg7[%c0_45, %c0_46, %c0_47], %65 {strides = array<i32>} : memref<1x4x1xf32, #tpu.memory_space<vmem>>, vector<1x4x1xf32>,
      %cst_48 = arith.constant 0.000000e+00 : f32
      %67 = vector.broadcast %cst_48 : f32 to vector<1x1x1xf32>
      %c0_49 = arith.constant 0 : index
      %c0_50 = arith.constant 0 : index
      %c0_51 = arith.constant 0 : index
      %68 = vector.load %arg8[%c0_49, %c0_50, %c0_51] : memref<1x1x1xf32, #tpu.memory_space<vmem>>, vector<1x1x1xf32>
      tpu.vector_store %arg8[%c0_49, %c0_50, %c0_51], %67 {strides = array<i32>} : memref<1x1x1xf32, #tpu.memory_space<vmem>>, vector<1x1x1xf32>,
    } else {
    }
    %c0 = arith.constant 0 : index
    %c0_1 = arith.constant 0 : index
    %c0_2 = arith.constant 0 : index
    %3 = vector.load %arg3[%c0, %c0_1, %c0_2] : memref<1x4x256xf32, #tpu.memory_space<vmem>>, vector<1x4x256xf32>
    %4 = vector.shape_cast %3 : vector<1x4x256xf32> to vector<4x256xf32>
    %c0_3 = arith.constant 0 : index
    %c0_4 = arith.constant 0 : index
    %c0_5 = arith.constant 0 : index
    %5 = vector.load %arg4[%c0_3, %c0_4, %c0_5] : memref<1x1x256xi32, #tpu.memory_space<vmem>>, vector<1x1x256xi32>
    %6 = vector.shape_cast %5 : vector<1x1x256xi32> to vector<1x256xi32>
    %cst = arith.constant dense<0xFF800000> : vector<256xf32>
    %7 = vector.multi_reduction <maximumf>, %4, %cst [0] : vector<4x256xf32> to vector<256xf32>
    %8 = vector.shape_cast %7 : vector<256xf32> to vector<1x256xf32>
    %9 = vector.broadcast %8 : vector<1x256xf32> to vector<4x256xf32>
    %10 = arith.subf %4, %9 : vector<4x256xf32>
    %11 = math.exp %10 : vector<4x256xf32>
    %cst_6 = arith.constant dense<0.000000e+00> : vector<256xf32>
    %12 = vector.multi_reduction <add>, %11, %cst_6 [0] : vector<4x256xf32> to vector<256xf32>
    %13 = vector.shape_cast %12 : vector<256xf32> to vector<1x256xf32>
    %14 = tpu.reciprocal %13 : vector<1x256xf32> -> vector<1x256xf32>
    %15 = vector.broadcast %14 : vector<1x256xf32> to vector<4x256xf32>
    %16 = arith.mulf %11, %15 : vector<4x256xf32>
    %17 = math.log %13 : vector<1x256xf32>
    %18 = arith.addf %8, %17 : vector<1x256xf32>
    %19 = tpu.iota {dimensions = array<i32: 0>} : vector<4x256xi32>
    %20 = vector.broadcast %6 : vector<1x256xi32> to vector<4x256xi32>
    %21 = arith.cmpi eq, %19, %20 : vector<4x256xi32>
    %22 = arith.extui %21 : vector<4x256xi1> to vector<4x256xi32>
    %23 = arith.sitofp %22 : vector<4x256xi32> to vector<4x256xf32>
    %24 = arith.mulf %4, %23 : vector<4x256xf32>
    %cst_7 = arith.constant dense<0.000000e+00> : vector<256xf32>
    %25 = vector.multi_reduction <add>, %24, %cst_7 [0] : vector<4x256xf32> to vector<256xf32>
    %26 = vector.shape_cast %25 : vector<256xf32> to vector<1x256xf32>
    %27 = arith.subf %18, %26 : vector<1x256xf32>
    %c0_8 = arith.constant 0 : index
    %c0_9 = arith.constant 0 : index
    %c0_10 = arith.constant 0 : index
    %28 = vector.load %arg5[%c0_8, %c0_9, %c0_10] : memref<1x4x1xf32, #tpu.memory_space<vmem>>, vector<1x4x1xf32>
    %29 = vector.shape_cast %28 : vector<1x4x1xf32> to vector<4x1xf32>
    %30 = arith.mulf %16, %23 : vector<4x256xf32>
    %cst_11 = arith.constant dense<0.000000e+00> : vector<4xf32>
    %31 = vector.multi_reduction <add>, %30, %cst_11 [1] : vector<4x256xf32> to vector<4xf32>
    %32 = vector.shape_cast %31 : vector<4xf32> to vector<4x1xf32>
    %33 = arith.addf %29, %32 : vector<4x1xf32>
    %c0_12 = arith.constant 0 : index
    %c0_13 = arith.constant 0 : index
    %c0_14 = arith.constant 0 : index
    %34 = vector.load %arg5[%c0_12, %c0_13, %c0_14] : memref<1x4x1xf32, #tpu.memory_space<vmem>>, vector<1x4x1xf32>
    %35 = vector.shape_cast %34 : vector<1x4x1xf32> to vector<4x1xf32>
    %36 = vector.shape_cast %33 : vector<4x1xf32> to vector<1x4x1xf32>
    tpu.vector_store %arg5[%c0_12, %c0_13, %c0_14], %36 {strides = array<i32>} : memref<1x4x1xf32, #tpu.memory_space<vmem>>, vector<1x4x1xf32>,
    %c0_15 = arith.constant 0 : index
    %c0_16 = arith.constant 0 : index
    %c0_17 = arith.constant 0 : index
    %37 = vector.load %arg6[%c0_15, %c0_16, %c0_17] : memref<1x4x1xf32, #tpu.memory_space<vmem>>, vector<1x4x1xf32>
    %38 = vector.shape_cast %37 : vector<1x4x1xf32> to vector<4x1xf32>
    %cst_18 = arith.constant dense<0.000000e+00> : vector<4xf32>
    %39 = vector.multi_reduction <add>, %16, %cst_18 [1] : vector<4x256xf32> to vector<4xf32>
    %40 = vector.shape_cast %39 : vector<4xf32> to vector<4x1xf32>
    %41 = arith.addf %38, %40 : vector<4x1xf32>
    %c0_19 = arith.constant 0 : index
    %c0_20 = arith.constant 0 : index
    %c0_21 = arith.constant 0 : index
    %42 = vector.load %arg6[%c0_19, %c0_20, %c0_21] : memref<1x4x1xf32, #tpu.memory_space<vmem>>, vector<1x4x1xf32>
    %43 = vector.shape_cast %42 : vector<1x4x1xf32> to vector<4x1xf32>
    %44 = vector.shape_cast %41 : vector<4x1xf32> to vector<1x4x1xf32>
    tpu.vector_store %arg6[%c0_19, %c0_20, %c0_21], %44 {strides = array<i32>} : memref<1x4x1xf32, #tpu.memory_space<vmem>>, vector<1x4x1xf32>,
    %c0_22 = arith.constant 0 : index
    %c0_23 = arith.constant 0 : index
    %c0_24 = arith.constant 0 : index
    %45 = vector.load %arg7[%c0_22, %c0_23, %c0_24] : memref<1x4x1xf32, #tpu.memory_space<vmem>>, vector<1x4x1xf32>
    %46 = vector.shape_cast %45 : vector<1x4x1xf32> to vector<4x1xf32>
    %cst_25 = arith.constant dense<0.000000e+00> : vector<4xf32>
    %47 = vector.multi_reduction <add>, %23, %cst_25 [1] : vector<4x256xf32> to vector<4xf32>
    %48 = vector.shape_cast %47 : vector<4xf32> to vector<4x1xf32>
    %49 = arith.addf %46, %48 : vector<4x1xf32>
    %c0_26 = arith.constant 0 : index
    %c0_27 = arith.constant 0 : index
    %c0_28 = arith.constant 0 : index
    %50 = vector.load %arg7[%c0_26, %c0_27, %c0_28] : memref<1x4x1xf32, #tpu.memory_space<vmem>>, vector<1x4x1xf32>
    %51 = vector.shape_cast %50 : vector<1x4x1xf32> to vector<4x1xf32>
    %52 = vector.shape_cast %49 : vector<4x1xf32> to vector<1x4x1xf32>
    tpu.vector_store %arg7[%c0_26, %c0_27, %c0_28], %52 {strides = array<i32>} : memref<1x4x1xf32, #tpu.memory_space<vmem>>, vector<1x4x1xf32>,
    %c0_29 = arith.constant 0 : index
    %c0_30 = arith.constant 0 : index
    %c0_31 = arith.constant 0 : index
    %53 = vector.load %arg8[%c0_29, %c0_30, %c0_31] : memref<1x1x1xf32, #tpu.memory_space<vmem>>, vector<1x1x1xf32>
    %54 = vector.shape_cast %53 : vector<1x1x1xf32> to vector<1x1xf32>
    %cst_32 = arith.constant dense<0.000000e+00> : vector<1xf32>
    %55 = vector.multi_reduction <add>, %27, %cst_32 [1] : vector<1x256xf32> to vector<1xf32>
    %56 = vector.shape_cast %55 : vector<1xf32> to vector<1x1xf32>
    %57 = arith.addf %54, %56 : vector<1x1xf32>
    %c0_33 = arith.constant 0 : index
    %c0_34 = arith.constant 0 : index
    %c0_35 = arith.constant 0 : index
    %58 = vector.load %arg8[%c0_33, %c0_34, %c0_35] : memref<1x1x1xf32, #tpu.memory_space<vmem>>, vector<1x1x1xf32>
    %59 = vector.shape_cast %58 : vector<1x1x1xf32> to vector<1x1xf32>
    %60 = vector.shape_cast %57 : vector<1x1xf32> to vector<1x1x1xf32>
    tpu.vector_store %arg8[%c0_33, %c0_34, %c0_35], %60 {strides = array<i32>} : memref<1x1x1xf32, #tpu.memory_space<vmem>>, vector<1x1x1xf32>,
    return
  }
  func.func @transform_0(%arg0: i32, %arg1: i32, %arg2: i32) -> (i32, i32, i32) {
    %c1_i32 = arith.constant 1 : i32
    %0 = arith.muli %arg1, %c1_i32 : i32
    %1 = arith.addi %0, %arg2 : i32
    %c0_i32 = arith.constant 0 : i32
    %c0_i32_0 = arith.constant 0 : i32
    return %arg0, %c0_i32, %1 : i32, i32, i32
  }
  func.func @transform_1(%arg0: i32, %arg1: i32, %arg2: i32) -> (i32, i32, i32) {
    %c1_i32 = arith.constant 1 : i32
    %0 = arith.muli %arg1, %c1_i32 : i32
    %1 = arith.addi %0, %arg2 : i32
    %c0_i32 = arith.constant 0 : i32
    %c0_i32_0 = arith.constant 0 : i32
    return %arg0, %c0_i32, %1 : i32, i32, i32
  }
  func.func @transform_2(%arg0: i32, %arg1: i32, %arg2: i32) -> (i32, i32, i32) {
    %c1_i32 = arith.constant 1 : i32
    %0 = arith.muli %arg0, %c1_i32 : i32
    %1 = arith.addi %0, %arg1 : i32
    %c0_i32 = arith.constant 0 : i32
    %c0_i32_0 = arith.constant 0 : i32
    %c0_i32_1 = arith.constant 0 : i32
    return %1, %c0_i32, %c0_i32_0 : i32, i32, i32
  }
  func.func @transform_3(%arg0: i32, %arg1: i32, %arg2: i32) -> (i32, i32, i32) {
    %c1_i32 = arith.constant 1 : i32
    %0 = arith.muli %arg0, %c1_i32 : i32
    %1 = arith.addi %0, %arg1 : i32
    %c0_i32 = arith.constant 0 : i32
    %c0_i32_0 = arith.constant 0 : i32
    %c0_i32_1 = arith.constant 0 : i32
    return %1, %c0_i32, %c0_i32_0 : i32, i32, i32
  }
  func.func @transform_4(%arg0: i32, %arg1: i32, %arg2: i32) -> (i32, i32, i32) {
    %c1_i32 = arith.constant 1 : i32
    %0 = arith.muli %arg0, %c1_i32 : i32
    %1 = arith.addi %0, %arg1 : i32
    %c0_i32 = arith.constant 0 : i32
    %c0_i32_0 = arith.constant 0 : i32
    %c0_i32_1 = arith.constant 0 : i32
    return %1, %c0_i32, %c0_i32_0 : i32, i32, i32
  }
  func.func @transform_5(%arg0: i32, %arg1: i32, %arg2: i32) -> (i32, i32, i32) {
    %c1_i32 = arith.constant 1 : i32
    %0 = arith.muli %arg0, %c1_i32 : i32
    %1 = arith.addi %0, %arg1 : i32
    %c0_i32 = arith.constant 0 : i32
    %c0_i32_0 = arith.constant 0 : i32
    %c0_i32_1 = arith.constant 0 : i32
    return %1, %c0_i32, %c0_i32_0 : i32, i32, i32
  }
}

</mosaic_0001>

<llo_original>
// kernel: tpu_custom_call.1
$region0: #{tpu_custom_call.1}
  #allocation0 [shape = 'u32[]', space=smem, size = 0x4, offset = 0x4, fixed_abs, tag = 'smem constant byte address 0x4 - core index']
  #allocation1 [shape = 'u32[72,128]{1,0:T(1,128)}', space=vmem, size = 0x9000, scoped, tag = 'internal scratch']
  %s0 = inlined_call_operand.hbm [shape: f32[2,4,256], index: 0, kind: input, shape index: {}]
  %s1 = inlined_call_operand.hbm [shape: s32[2,1,256], index: 1, kind: input, shape index: {}]
  %s2 = inlined_call_operand.vmem [shape: f32[2,4,1], index: 2, kind: output, shape index: {0}]
  %s3 = inlined_call_operand.vmem [shape: f32[2,4,1], index: 3, kind: output, shape index: {1}]
  %s4 = inlined_call_operand.vmem [shape: f32[2,4,1], index: 4, kind: output, shape index: {2}]
  %s5 = inlined_call_operand.vmem [shape: f32[2,1,1], index: 5, kind: output, shape index: {3}]
  %6 = xla_tuple %s2, %s3, %s4, %s5
  %s7 = sld [smem:[#allocation0]]
  $region77: #{tpu_custom_call.1} parent=0
    _
  %s9 = ssub.s32 1, %s7
  %s10 = scalar_select 0, %s9, %s7
  $region1: #{tpu_custom_call.1} parent=0
    #allocation2 [shape = 'u8[8192]{0}', space=vmem, size = 0x2000, scoped, tag = 'input window, operand 0']
    #allocation3 [shape = 's32[2]{0}', space=sflag, size = 0x8, scoped, tag = 'scoped memory for tpu_custom_call.1']
    #allocation4 [shape = 'u8[2048]{0}', space=vmem, size = 0x800, scoped, tag = 'input window, operand 1']
    #allocation5 [shape = 's32[2]{0}', space=sflag, size = 0x8, scoped, tag = 'scoped memory for tpu_custom_call.1']
    %11 = vsyncpa [#allocation3], 0
    %s12 = scalar_lea.sflag [#allocation3], 1
    %13 = vsyncpa %s12, 0
    %14 = vsyncpa [#allocation5], 0
    %s15 = scalar_lea.sflag [#allocation5], 1
    %16 = vsyncpa %s15, 0
    loop: start=0, step=1, limit=4
    $region2: #{tpu_custom_call.1} parent=1 // loop_pre_header
      _
    $region3: #{tpu_custom_call.1} parent=1 // loop_header
      %s18 = sphi 0, %s22
      %p19 = scmp.ge.s32.totalorder %s18, 4
      %s25 = sphi 0, %s44
      %s26 = sphi 0, %s40
      %s27 = sphi 0, %s36
      %s28 = sphi 0, %s25
      %s29 = sphi 0, %s26
      %s30 = sphi 0, %s27
      %s31 = sphi 0, %s28
      %s32 = sphi 0, %s29
      %s33 = sphi 0, %s30
      %s51 = sphi 0, %s53
      %s54 = sphi 0, %s51
      %s55 = sphi 0, %s54
      %s71 = sphi 0, %s55
      %s81 = sphi 0, %s83
      %s84 = sphi 0, %s81
      %s85 = sphi 0, %s84
      %s101 = sphi 0, %s85
      %s109 = sphi 0, %s111
      %s112 = sphi 0, %s109
      %s113 = sphi 0, %s112
      %s129 = sphi 0, %s113
      %s137 = sphi 0, %s139
      %s140 = sphi 0, %s137
      %s141 = sphi 0, %s140
      %s157 = sphi 0, %s141
      %s165 = sphi 0, %s167
      %s168 = sphi 0, %s165
      %s169 = sphi 0, %s168
      %s185 = sphi 0, %s169
      %s193 = sphi 0, %s195
      %s196 = sphi 0, %s193
      %s197 = sphi 0, %s196
      %s213 = sphi 0, %s197
    $region4: #{tpu_custom_call.1} parent=1 // loop_header_branch
      %21 = sbr.rel (%p19) target = $region8
    $region5: #{tpu_custom_call.1} parent=1 // loop_body
      %s23 = ssub.s32 %s18, 1
      %s24 = ssub.s32 %s18, 2
      %s34 = sadd.s32 1, %s27
      %p35 = scmp.ge.s32.totalorder %s34, 1
      %s36 = scalar_select %p35, 0, %s34
      %s37 = sadd.s32 1, %s26
      %s38 = scalar_select %p35, %s37, %s26
      %p39 = scmp.ge.s32.totalorder %s38, 1
      %s40 = scalar_select %p39, 0, %s38
      %s41 = sadd.s32 1, %s25
      %s42 = scalar_select %p39, %s41, %s25
      %p43 = scmp.ge.s32.totalorder %s42, 2
      %s44 = scalar_select %p43, 0, %s42
      %s45 = sadd.s32 %s26, %s27
      %s46 = sadd.s32 %s40, %s36
      %s47 = ssub.s32 %s25, %s44
      %s48 = ssub.s32 %s45, %s46
      %s49 = sor.u32 %s47, %s48
      %p50 = scmp.eq.s32.totalorder %s49, 0
      %s52 = sadd.s32 %s51, 1
      %s53 = scalar_select %p50, %s51, %s52
      %p56 = pneg %p50
      %p57 = scmp.eq.s32.totalorder %s18, 1
      %p58 = por %p56, %p57
      %p59 = scmp.ne.s32.totalorder %s51, %s54
      %p60 = scmp.eq.s32.totalorder %s18, 0
      %p61 = por %p59, %p60
      %p62 = scmp.ne.s32.totalorder %s51, %s54
      %p63 = scmp.eq.s32.totalorder %s23, 1
      %p64 = por %p62, %p63
      %p65 = scmp.ne.s32.totalorder %s54, %s55
      %p66 = scmp.eq.s32.totalorder %s23, 0
      %p67 = por %p65, %p66
      %p68 = scmp.ne.s32.totalorder %s54, %s55
      %p69 = scmp.eq.s32.totalorder %s24, 1
      %p70 = por %p68, %p69
      %p72 = scmp.ne.s32.totalorder %s55, %s71
      %p73 = scmp.eq.s32.totalorder %s24, 0
      %p74 = por %p72, %p73
      %s75 = sadd.s32 %s26, %s27
      %s76 = sadd.s32 %s40, %s36
      %s77 = ssub.s32 %s25, %s44
      %s78 = ssub.s32 %s75, %s76
      %s79 = sor.u32 %s77, %s78
      %p80 = scmp.eq.s32.totalorder %s79, 0
      %s82 = sadd.s32 %s81, 1
      %s83 = scalar_select %p80, %s81, %s82
      %p86 = pneg %p80
      %p87 = scmp.eq.s32.totalorder %s18, 1
      %p88 = por %p86, %p87
      %p89 = scmp.ne.s32.totalorder %s81, %s84
      %p90 = scmp.eq.s32.totalorder %s18, 0
      %p91 = por %p89, %p90
      %p92 = scmp.ne.s32.totalorder %s81, %s84
      %p93 = scmp.eq.s32.totalorder %s23, 1
      %p94 = por %p92, %p93
      %p95 = scmp.ne.s32.totalorder %s84, %s85
      %p96 = scmp.eq.s32.totalorder %s23, 0
      %p97 = por %p95, %p96
      %p98 = scmp.ne.s32.totalorder %s84, %s85
      %p99 = scmp.eq.s32.totalorder %s24, 1
      %p100 = por %p98, %p99
      %p102 = scmp.ne.s32.totalorder %s85, %s101
      %p103 = scmp.eq.s32.totalorder %s24, 0
      %p104 = por %p102, %p103
      %s105 = sadd.s32 %s25, %s26
      %s106 = sadd.s32 %s44, %s40
      %s107 = ssub.s32 %s105, %s106
      %p108 = scmp.eq.s32.totalorder %s107, 0
      %s110 = sadd.s32 %s109, 1
      %s111 = scalar_select %p108, %s109, %s110
      %p114 = pneg %p108
      %p115 = scmp.eq.s32.totalorder %s18, 1
      %p116 = por %p114, %p115
      %p117 = scmp.ne.s32.totalorder %s109, %s112
      %p118 = scmp.eq.s32.totalorder %s18, 0
      %p119 = por %p117, %p118
      %p120 = scmp.ne.s32.totalorder %s109, %s112
      %p121 = scmp.eq.s32.totalorder %s23, 1
      %p122 = por %p120, %p121
      %p123 = scmp.ne.s32.totalorder %s112, %s113
      %p124 = scmp.eq.s32.totalorder %s23, 0
      %p125 = por %p123, %p124
      %p126 = scmp.ne.s32.totalorder %s112, %s113
      %p127 = scmp.eq.s32.totalorder %s24, 1
      %p128 = por %p126, %p127
      %p130 = scmp.ne.s32.totalorder %s113, %s129
      %p131 = scmp.eq.s32.totalorder %s24, 0
      %p132 = por %p130, %p131
      %s133 = sadd.s32 %s25, %s26
      %s134 = sadd.s32 %s44, %s40
      %s135 = ssub.s32 %s133, %s134
      %p136 = scmp.eq.s32.totalorder %s135, 0
      %s138 = sadd.s32 %s137, 1
      %s139 = scalar_select %p136, %s137, %s138
      %p142 = pneg %p136
      %p143 = scmp.eq.s32.totalorder %s18, 1
      %p144 = por %p142, %p143
      %p145 = scmp.ne.s32.totalorder %s137, %s140
      %p146 = scmp.eq.s32.totalorder %s18, 0
      %p147 = por %p145, %p146
      %p148 = scmp.ne.s32.totalorder %s137, %s140
      %p149 = scmp.eq.s32.totalorder %s23, 1
      %p150 = por %p148, %p149
      %p151 = scmp.ne.s32.totalorder %s140, %s141
      %p152 = scmp.eq.s32.totalorder %s23, 0
      %p153 = por %p151, %p152
      %p154 = scmp.ne.s32.totalorder %s140, %s141
      %p155 = scmp.eq.s32.totalorder %s24, 1
      %p156 = por %p154, %p155
      %p158 = scmp.ne.s32.totalorder %s141, %s157
      %p159 = scmp.eq.s32.totalorder %s24, 0
      %p160 = por %p158, %p159
      %s161 = sadd.s32 %s25, %s26
      %s162 = sadd.s32 %s44, %s40
      %s163 = ssub.s32 %s161, %s162
      %p164 = scmp.eq.s32.totalorder %s163, 0
      %s166 = sadd.s32 %s165, 1
      %s167 = scalar_select %p164, %s165, %s166
      %p170 = pneg %p164
      %p171 = scmp.eq.s32.totalorder %s18, 1
      %p172 = por %p170, %p171
      %p173 = scmp.ne.s32.totalorder %s165, %s168
      %p174 = scmp.eq.s32.totalorder %s18, 0
      %p175 = por %p173, %p174
      %p176 = scmp.ne.s32.totalorder %s165, %s168
      %p177 = scmp.eq.s32.totalorder %s23, 1
      %p178 = por %p176, %p177
      %p179 = scmp.ne.s32.totalorder %s168, %s169
      %p180 = scmp.eq.s32.totalorder %s23, 0
      %p181 = por %p179, %p180
      %p182 = scmp.ne.s32.totalorder %s168, %s169
      %p183 = scmp.eq.s32.totalorder %s24, 1
      %p184 = por %p182, %p183
      %p186 = scmp.ne.s32.totalorder %s169, %s185
      %p187 = scmp.eq.s32.totalorder %s24, 0
      %p188 = por %p186, %p187
      %s189 = sadd.s32 %s25, %s26
      %s190 = sadd.s32 %s44, %s40
      %s191 = ssub.s32 %s189, %s190
      %p192 = scmp.eq.s32.totalorder %s191, 0
      %s194 = sadd.s32 %s193, 1
      %s195 = scalar_select %p192, %s193, %s194
      %p198 = pneg %p192
      %p199 = scmp.eq.s32.totalorder %s18, 1
      %p200 = por %p198, %p199
      %p201 = scmp.ne.s32.totalorder %s193, %s196
      %p202 = scmp.eq.s32.totalorder %s18, 0
      %p203 = por %p201, %p202
      %p204 = scmp.ne.s32.totalorder %s193, %s196
      %p205 = scmp.eq.s32.totalorder %s23, 1
      %p206 = por %p204, %p205
      %p207 = scmp.ne.s32.totalorder %s196, %s197
      %p208 = scmp.eq.s32.totalorder %s23, 0
      %p209 = por %p207, %p208
      %p210 = scmp.ne.s32.totalorder %s196, %s197
      %p211 = scmp.eq.s32.totalorder %s24, 1
      %p212 = por %p210, %p211
      %p214 = scmp.ne.s32.totalorder %s197, %s213
      %p215 = scmp.eq.s32.totalorder %s24, 0
      %p216 = por %p214, %p215
      %p217 = scmp.le.s32.totalorder 1, %s18
      %p218 = scmp.lt.s32.totalorder %s18, 3
      %p219 = pnand %p217, %p218
      %p220 = pneg %p219
      // Predicated region
      $region9: #{tpu_custom_call.1} parent=5 // pred_check
        _
      $region10: #{tpu_custom_call.1} parent=5 // pred_check_branch
        %222 = sbr.rel (%p219) target = $region12
      $region11: #{tpu_custom_call.1} parent=5 // pred_region
        %s223 = ssub.s32 %s18, 1
      $region12: #{tpu_custom_call.1} parent=5 // pred_fallthru
        _
      %p224 = scmp.lt.s32.totalorder %s18, 2
      // Predicated region
      $region13: #{tpu_custom_call.1} parent=5 // pred_check
        %p225 = pneg %p224
      $region14: #{tpu_custom_call.1} parent=5 // pred_check_branch
        %227 = sbr.rel (%p225) target = $region16
      $region15: #{tpu_custom_call.1} parent=5 // pred_region
        // Predicated region
        $region17: #{tpu_custom_call.1} parent=15 // pred_check
          %p228 = pneg %p61
        $region18: #{tpu_custom_call.1} parent=15 // pred_check_branch
          %230 = sbr.rel (%p228) target = $region20
        $region19: #{tpu_custom_call.1} parent=15 // pred_region
          %s231 = sand.u32 %s51, 1
          %s232 = scalar_lea.sflag [#allocation3], %s231
          %s233 = sand.u32 %s51, 1
          %s234 = smul.addr %s233, 8
          %s235 = scalar_lea.vmem [#allocation2], %s234
          %s236 = sadd.s32 %s26, %s27
          %s237 = smul.u32 2, %s236
          %239 = vsyncadd %s232, 0
          %s240 = smul.addr %s25, 2
          %s241 = sadd.s32 %s237, %s240
          %s242 = smul.addr %s241, 4
          %s243 = scalar_lea.hbm %s0, %s242
          %s245 = sshll.u32 %s243, 4
          %s246 = int_to_ptr.hbm [resolvable:$true] %s245
          %s247 = sshll.u32 %s235, 4
          %s248 = int_to_ptr.vmem [resolvable:$true] %s247
          %250 = dma.hbm_to_vmem [thread:$0]  %s246, 128, %s248, %s232
        $region20: #{tpu_custom_call.1} parent=15 // pred_fallthru
          _
        // Predicated region
        $region21: #{tpu_custom_call.1} parent=15 // pred_check
          %p251 = pneg %p91
        $region22: #{tpu_custom_call.1} parent=15 // pred_check_branch
          %253 = sbr.rel (%p251) target = $region24
        $region23: #{tpu_custom_call.1} parent=15 // pred_region
          %s254 = sand.u32 %s81, 1
          %s255 = scalar_lea.sflag [#allocation5], %s254
          %s256 = sand.u32 %s81, 1
          %s257 = smul.addr %s256, 2
          %s258 = scalar_lea.vmem [#allocation4], %s257
          %s259 = sadd.s32 %s26, %s27
          %s260 = smul.u32 2, %s259
          %262 = vsyncadd %s255, 0
          %s263 = smul.addr %s25, 2
          %s264 = sadd.s32 %s260, %s263
          %s265 = scalar_lea.hbm %s1, %s264
          %s267 = sshll.u32 %s265, 4
          %s268 = int_to_ptr.hbm [resolvable:$true] %s267
          %s269 = sshll.u32 %s258, 4
          %s270 = int_to_ptr.vmem [resolvable:$true] %s269
          %272 = dma.hbm_to_vmem [thread:$0]  %s268, 32, %s270, %s255
        $region24: #{tpu_custom_call.1} parent=15 // pred_fallthru
          _
      $region16: #{tpu_custom_call.1} parent=5 // pred_fallthru
        _
      %p273 = scmp.le.s32.totalorder 1, %s18
      %p274 = scmp.lt.s32.totalorder %s18, 3
      %p275 = pnand %p273, %p274
      %p276 = pneg %p275
      // Predicated region
      $region25: #{tpu_custom_call.1} parent=5 // pred_check
        _
      $region26: #{tpu_custom_call.1} parent=5 // pred_check_branch
        %278 = sbr.rel (%p275) target = $region28
      $region27: #{tpu_custom_call.1} parent=5 // pred_region
        %s279 = ssub.s32 %s18, 1
        %s280 = sand.u32 %s54, 1
        %s281 = scalar_lea.sflag [#allocation3], %s280
        %s282 = sand.u32 %s54, 1
        %s283 = smul.addr %s282, 8
        %s284 = scalar_lea.vmem [#allocation2], %s283
        // Predicated region
        $region29: #{tpu_custom_call.1} parent=27 // pred_check
          %p285 = pneg %p67
        $region30: #{tpu_custom_call.1} parent=27 // pred_check_branch
          %287 = sbr.rel (%p285) target = $region32
        $region31: #{tpu_custom_call.1} parent=27 // pred_region
          %289 = dma.done %s281, 128
        $region32: #{tpu_custom_call.1} parent=27 // pred_fallthru
          _
        %s290 = sand.u32 %s84, 1
        %s291 = scalar_lea.sflag [#allocation5], %s290
        %s292 = sand.u32 %s84, 1
        %s293 = smul.addr %s292, 2
        %s294 = scalar_lea.vmem [#allocation4], %s293
        // Predicated region
        $region33: #{tpu_custom_call.1} parent=27 // pred_check
          %p295 = pneg %p97
        $region34: #{tpu_custom_call.1} parent=27 // pred_check_branch
          %297 = sbr.rel (%p295) target = $region36
        $region35: #{tpu_custom_call.1} parent=27 // pred_region
          %299 = dma.done %s291, 32
        $region36: #{tpu_custom_call.1} parent=27 // pred_fallthru
          _
        %s300 = sand.u32 %s54, 1
        %s301 = scalar_lea.sflag [#allocation3], %s300
        %s302 = sand.u32 %s54, 1
        %s303 = smul.addr %s302, 8
        %s304 = scalar_lea.vmem [#allocation2], %s303
        %p305 = pneg %p67
        %p306 = pneg %p64
        %s307 = sand.u32 %s84, 1
        %s308 = scalar_lea.sflag [#allocation5], %s307
        %s309 = sand.u32 %s84, 1
        %s310 = smul.addr %s309, 2
        %s311 = scalar_lea.vmem [#allocation4], %s310
        %p312 = pneg %p97
        %p313 = pneg %p94
        %p314 = pneg %p125
        %p315 = pneg %p122
        %s316 = sadd.s32 %s28, %s29
        %p317 = scmp.lt.s32.totalorder %s316, 1
        %s318 = scalar_select %p317, %s316, 1
        %s319 = smul.addr %s318, 4
        %s320 = scalar_lea.vmem %s2, %s319
        %p321 = pneg %p153
        %p322 = pneg %p150
        %s323 = sadd.s32 %s28, %s29
        %p324 = scmp.lt.s32.totalorder %s323, 1
        %s325 = scalar_select %p324, %s323, 1
        %s326 = smul.addr %s325, 4
        %s327 = scalar_lea.vmem %s3, %s326
        %p328 = pneg %p181
        %p329 = pneg %p178
        %s330 = sadd.s32 %s28, %s29
        %p331 = scmp.lt.s32.totalorder %s330, 1
        %s332 = scalar_select %p331, %s330, 1
        %s333 = smul.addr %s332, 4
        %s334 = scalar_lea.vmem %s4, %s333
        %p335 = pneg %p209
        %p336 = pneg %p206
        %s337 = sadd.s32 %s28, %s29
        %p338 = scmp.lt.s32.totalorder %s337, 1
        %s339 = scalar_select %p338, %s337, 1
        %s340 = scalar_lea.vmem %s5, %s339
        %s341 = sadd.s32 %s29, %s30
        %s342 = smul.u32 2, %s341
        %s343 = sadd.s32 %s29, %s30
        %s344 = smul.u32 2, %s343
        %s345 = sadd.s32 %s28, %s29
        %p346 = scmp.lt.s32.totalorder %s345, 1
        %s347 = scalar_select %p346, %s345, 1
        %s348 = smul.addr %s347, 4
        %s349 = scalar_lea.vmem %s2, %s348
        %s350 = sadd.s32 %s28, %s29
        %s351 = sadd.s32 %s28, %s29
        %p352 = scmp.lt.s32.totalorder %s351, 1
        %s353 = scalar_select %p352, %s351, 1
        %s354 = smul.addr %s353, 4
        %s355 = scalar_lea.vmem %s3, %s354
        %s356 = sadd.s32 %s28, %s29
        %s357 = sadd.s32 %s28, %s29
        %p358 = scmp.lt.s32.totalorder %s357, 1
        %s359 = scalar_select %p358, %s357, 1
        %s360 = smul.addr %s359, 4
        %s361 = scalar_lea.vmem %s4, %s360
        %s362 = sadd.s32 %s28, %s29
        %s363 = sadd.s32 %s28, %s29
        %p364 = scmp.lt.s32.totalorder %s363, 1
        %s365 = scalar_select %p364, %s363, 1
        %s366 = scalar_lea.vmem %s5, %s365
        %s367 = sadd.s32 %s28, %s29
        %p368 = scmp.eq.s32.totalorder %s30, 0
        // Predicated region
        $region37: #{tpu_custom_call.1} parent=27 // pred_check
          %p369 = pneg %p368
        $region38: #{tpu_custom_call.1} parent=27 // pred_check_branch
          %371 = sbr.rel (%p369) target = $region40
        $region39: #{tpu_custom_call.1} parent=27 // pred_region
          %vm372 = vcmask 3072
          %373 = vst.msk [vmem:[%s349] sm:$0xf] %vm372, 0.0
          %374 = vst.msk [vmem:[%s355] sm:$0xf] %vm372, 0.0
          %375 = vst.msk [vmem:[%s361] sm:$0xf] %vm372, 0.0
          %vm376 = vcmask 0
          %377 = vst.msk [vmem:[%s366] sm:$0x1] %vm376, 0.0
        $region40: #{tpu_custom_call.1} parent=27 // pred_fallthru
          _
        %v378 = vld [vmem:[%s284] sm:$0xff]
        %v379 = vld [vmem:[%s294] sm:$0x3]
        %381 = vst [vmem:[#allocation1] ss:$2 sm:$0xff] %v378
        %v382 = vld.sshfl [vmem:[#allocation1] sm:$0xff pattern:$0x75316420]
        %v383 = vld.sshfl [vmem:[#allocation1 + $0x8] sm:$0xff pattern:$0x75316420]
        %vm386 = vcmask 1043456
        %v387 = vsel %vm386, %v382, -inf
        %v388 = vrot.slane %v387, 4
        %v389 = vmax.f32 %v387, %v388
        %v390 = vrot.slane %v389, 2
        %v391 = vmax.f32 %v389, %v390
        %v392 = vrot.slane %v391, 1
        %v393 = vmax.f32 %v391, %v392
        %v394 = vsel %vm386, %v383, -inf
        %v395 = vrot.slane %v394, 4
        %v396 = vmax.f32 %v394, %v395
        %v397 = vrot.slane %v396, 2
        %v398 = vmax.f32 %v396, %v397
        %v399 = vrot.slane %v398, 1
        %v400 = vmax.f32 %v398, %v399
        %v403 = vrot.slane %v400, 4
        %v404 = vsel %vm386, %v393, %v403
        %v406 = vsub.f32 %v378, %v404
        %v407 = vmul.f32 %v406, 1.442695
        %v408 = vpow.pop %v407
        %410 = vst [vmem:[#allocation1] ss:$2 sm:$0xff] %v408
        %v411 = vld.sshfl [vmem:[#allocation1] sm:$0xff pattern:$0x75316420]
        %v412 = vld.sshfl [vmem:[#allocation1 + $0x8] sm:$0xff pattern:$0x75316420]
        %v415 = vsel %vm386, %v411, 0.0
        %v416 = vrot.slane %v415, 4
        %v417 = vadd.f32 %v415, %v416
        %v418 = vrot.slane %v417, 2
        %v419 = vadd.f32 %v417, %v418
        %v420 = vrot.slane %v419, 1
        %v421 = vadd.f32 %v419, %v420
        %v422 = vsel %vm386, %v412, 0.0
        %v423 = vrot.slane %v422, 4
        %v424 = vadd.f32 %v422, %v423
        %v425 = vrot.slane %v424, 2
        %v426 = vadd.f32 %v424, %v425
        %v427 = vrot.slane %v426, 1
        %v428 = vadd.f32 %v426, %v427
        %v429 = vrcp.pop %v421
        %v430 = vmul.f32 %v421, %v429
        %v431 = vsub.f32 1.0, %v430
        %v432 = vmul.f32 %v429, %v431
        %v433 = vadd.f32 %v429, %v432
        %vm434 = vweird.f32 %v421
        %vm435 = vweird.f32 %v429
        %vm436 = vmor %vm434, %vm435
        %v437 = vsel %vm436, %v429, %v433
        %v438 = vand.u32 2147483647, %v421
        %vm439 = vcmp.eq.f32.partialorder %v438, 8.507059e+37
        %v440 = vand.u32 %v421, 2147483648
        %v441 = vor.u32 1.1754944e-38, %v440
        %v442 = vsel %vm439, %v441, %v437
        %v443 = vrcp.pop %v428
        %v444 = vmul.f32 %v428, %v443
        %v445 = vsub.f32 1.0, %v444
        %v446 = vmul.f32 %v443, %v445
        %v447 = vadd.f32 %v443, %v446
        %vm448 = vweird.f32 %v428
        %vm449 = vweird.f32 %v443
        %vm450 = vmor %vm448, %vm449
        %v451 = vsel %vm450, %v443, %v447
        %v452 = vand.u32 2147483647, %v428
        %vm453 = vcmp.eq.f32.partialorder %v452, 8.507059e+37
        %v454 = vand.u32 %v428, 2147483648
        %v455 = vor.u32 1.1754944e-38, %v454
        %v456 = vsel %vm453, %v455, %v451
        %v459 = vrot.slane %v456, 4
        %v460 = vsel %vm386, %v442, %v459
        %v462 = vmul.f32 %v408, %v460
        %v463 = vlog2.pop %v421
        %v464 = vmul.f32 %v463, 0.6931472
        %v465 = vlog2.pop %v428
        %v466 = vmul.f32 %v465, 0.6931472
        %v467 = vadd.f32 %v393, %v464
        %v468 = vadd.f32 %v400, %v466
        %v469 = vlaneseq
        %v470 = vshrl.u32 %v469, 7
        %v471 = vperm.slane %v379, 0
        %v472 = vperm.slane %v379, 1
        %vm473 = vcmp.eq.s32.totalorder %v470, %v471
        %vm474 = vcmp.eq.s32.totalorder %v470, %v472
        %v475 = vsel %vm473, 1, 0
        %v476 = vsel %vm474, 1, 0
        %v477 = vcvt.s32.f32 %v475
        %v478 = vcvt.s32.f32 %v476
        %v481 = vrot.slane %v478, 4
        %v482 = vsel %vm386, %v477, %v481
        %v484 = vmul.f32 %v378, %v482
        %486 = vst [vmem:[#allocation1] ss:$2 sm:$0xff] %v484
        %v487 = vld.sshfl [vmem:[#allocation1] sm:$0xff pattern:$0x75316420]
        %v488 = vld.sshfl [vmem:[#allocation1 + $0x8] sm:$0xff pattern:$0x75316420]
        %v491 = vsel %vm386, %v487, 0.0
        %v492 = vrot.slane %v491, 4
        %v493 = vadd.f32 %v491, %v492
        %v494 = vrot.slane %v493, 2
        %v495 = vadd.f32 %v493, %v494
        %v496 = vrot.slane %v495, 1
        %v497 = vadd.f32 %v495, %v496
        %v498 = vsel %vm386, %v488, 0.0
        %v499 = vrot.slane %v498, 4
        %v500 = vadd.f32 %v498, %v499
        %v501 = vrot.slane %v500, 2
        %v502 = vadd.f32 %v500, %v501
        %v503 = vrot.slane %v502, 1
        %v504 = vadd.f32 %v502, %v503
        %v505 = vsub.f32 %v467, %v497
        %v506 = vsub.f32 %v468, %v504
        %v507 = vld [vmem:[%s349] sm:$0xf]
        %v508 = vmul.f32 %v462, %v482
        %510 = vst [vmem:[#allocation1] ss:$2 sm:$0xff] %v508
        %v511 = vld.sshfl [vmem:[#allocation1] sm:$0xff pattern:$0x75316420]
        %v512 = vld.sshfl [vmem:[#allocation1 + $0x8] sm:$0xff pattern:$0x75316420]
        %v515 = vsel %vm386, %v511, 0.0
        %v516 = vsel %vm386, %v512, 0.0
        %v517 = vadd.f32 %v515, %v516
        %518 = vadd.xlane.f32.xlu0 %v517
        %v519 = vpop.xlane.xlu0 %518
        %v520 = vadd.f32 %v507, %v519
        %vm521 = vcmask 3072
        %522 = vst.msk [vmem:[%s349] sm:$0xf] %vm521, %v520
        %v523 = vld [vmem:[%s355] sm:$0xf]
        %525 = vst [vmem:[#allocation1] ss:$2 sm:$0xff] %v462
        %v526 = vld.sshfl [vmem:[#allocation1] sm:$0xff pattern:$0x75316420]
        %v527 = vld.sshfl [vmem:[#allocation1 + $0x8] sm:$0xff pattern:$0x75316420]
        %v530 = vsel %vm386, %v526, 0.0
        %v531 = vsel %vm386, %v527, 0.0
        %v532 = vadd.f32 %v530, %v531
        %533 = vadd.xlane.f32.xlu0 %v532
        %v534 = vpop.xlane.xlu0 %533
        %v535 = vadd.f32 %v523, %v534
        %536 = vst.msk [vmem:[%s355] sm:$0xf] %vm521, %v535
        %v537 = vld [vmem:[%s361] sm:$0xf]
        %v538 = vsel %vm386, %v477, 0.0
        %v539 = vsel %vm386, %v478, 0.0
        %v540 = vadd.f32 %v538, %v539
        %541 = vadd.xlane.f32.xlu0 %v540
        %v542 = vpop.xlane.xlu0 %541
        %v543 = vadd.f32 %v537, %v542
        %544 = vst.msk [vmem:[%s361] sm:$0xf] %vm521, %v543
        %v545 = vld [vmem:[%s366] sm:$0x1]
        %v546 = vadd.f32 %v505, %v506
        %547 = vadd.xlane.f32.xlu0 %v546
        %v548 = vpop.xlane.xlu0 %547
        %v549 = vadd.f32 %v545, %v548
        %vm550 = vcmask 0
        %551 = vst.msk [vmem:[%s366] sm:$0x1] %vm550, %v549
        %s552 = sadd.s32 %s28, %s29
        %p553 = scmp.lt.s32.totalorder %s552, 1
        %s554 = scalar_select %p553, %s552, 1
        %s555 = smul.addr %s554, 4
        %s556 = scalar_lea.vmem %s2, %s555
        %s557 = sadd.s32 %s28, %s29
        %p558 = scmp.lt.s32.totalorder %s557, 1
        %s559 = scalar_select %p558, %s557, 1
        %s560 = smul.addr %s559, 4
        %s561 = scalar_lea.vmem %s3, %s560
        %s562 = sadd.s32 %s28, %s29
        %p563 = scmp.lt.s32.totalorder %s562, 1
        %s564 = scalar_select %p563, %s562, 1
        %s565 = smul.addr %s564, 4
        %s566 = scalar_lea.vmem %s4, %s565
        %s567 = sadd.s32 %s28, %s29
        %p568 = scmp.lt.s32.totalorder %s567, 1
        %s569 = scalar_select %p568, %s567, 1
        %s570 = scalar_lea.vmem %s5, %s569
        // Predicated region
        $region41: #{tpu_custom_call.1} parent=27 // pred_check
          %p571 = pneg %p122
        $region42: #{tpu_custom_call.1} parent=27 // pred_check_branch
          %573 = sbr.rel (%p571) target = $region44
        $region43: #{tpu_custom_call.1} parent=27 // pred_region
          %s574 = sadd.s32 %s28, %s29
        $region44: #{tpu_custom_call.1} parent=27 // pred_fallthru
          _
        // Predicated region
        $region45: #{tpu_custom_call.1} parent=27 // pred_check
          %p575 = pneg %p150
        $region46: #{tpu_custom_call.1} parent=27 // pred_check_branch
          %577 = sbr.rel (%p575) target = $region48
        $region47: #{tpu_custom_call.1} parent=27 // pred_region
          %s578 = sadd.s32 %s28, %s29
        $region48: #{tpu_custom_call.1} parent=27 // pred_fallthru
          _
        // Predicated region
        $region49: #{tpu_custom_call.1} parent=27 // pred_check
          %p579 = pneg %p178
        $region50: #{tpu_custom_call.1} parent=27 // pred_check_branch
          %581 = sbr.rel (%p579) target = $region52
        $region51: #{tpu_custom_call.1} parent=27 // pred_region
          %s582 = sadd.s32 %s28, %s29
        $region52: #{tpu_custom_call.1} parent=27 // pred_fallthru
          _
        // Predicated region
        $region53: #{tpu_custom_call.1} parent=27 // pred_check
          %p583 = pneg %p206
        $region54: #{tpu_custom_call.1} parent=27 // pred_check_branch
          %585 = sbr.rel (%p583) target = $region56
        $region55: #{tpu_custom_call.1} parent=27 // pred_region
          %s586 = sadd.s32 %s28, %s29
        $region56: #{tpu_custom_call.1} parent=27 // pred_fallthru
          _
      $region28: #{tpu_custom_call.1} parent=5 // pred_fallthru
        _
      %p587 = scmp.le.s32.totalorder 2, %s18
      // Predicated region
      $region57: #{tpu_custom_call.1} parent=5 // pred_check
        %p588 = pneg %p587
      $region58: #{tpu_custom_call.1} parent=5 // pred_check_branch
        %590 = sbr.rel (%p588) target = $region60
      $region59: #{tpu_custom_call.1} parent=5 // pred_region
        %s591 = ssub.s32 %s18, 2
        // Predicated region
        $region61: #{tpu_custom_call.1} parent=59 // pred_check
          %p592 = pneg %p128
        $region62: #{tpu_custom_call.1} parent=59 // pred_check_branch
          %594 = sbr.rel (%p592) target = $region64
        $region63: #{tpu_custom_call.1} parent=59 // pred_region
          %s595 = sadd.s32 %s31, %s32
          %p596 = scmp.lt.s32.totalorder %s595, 1
          %s597 = scalar_select %p596, %s595, 1
          %s598 = smul.addr %s597, 4
          %s599 = scalar_lea.vmem %s2, %s598
        $region64: #{tpu_custom_call.1} parent=59 // pred_fallthru
          _
        // Predicated region
        $region65: #{tpu_custom_call.1} parent=59 // pred_check
          %p600 = pneg %p156
        $region66: #{tpu_custom_call.1} parent=59 // pred_check_branch
          %602 = sbr.rel (%p600) target = $region68
        $region67: #{tpu_custom_call.1} parent=59 // pred_region
          %s603 = sadd.s32 %s31, %s32
          %p604 = scmp.lt.s32.totalorder %s603, 1
          %s605 = scalar_select %p604, %s603, 1
          %s606 = smul.addr %s605, 4
          %s607 = scalar_lea.vmem %s3, %s606
        $region68: #{tpu_custom_call.1} parent=59 // pred_fallthru
          _
        // Predicated region
        $region69: #{tpu_custom_call.1} parent=59 // pred_check
          %p608 = pneg %p184
        $region70: #{tpu_custom_call.1} parent=59 // pred_check_branch
          %610 = sbr.rel (%p608) target = $region72
        $region71: #{tpu_custom_call.1} parent=59 // pred_region
          %s611 = sadd.s32 %s31, %s32
          %p612 = scmp.lt.s32.totalorder %s611, 1
          %s613 = scalar_select %p612, %s611, 1
          %s614 = smul.addr %s613, 4
          %s615 = scalar_lea.vmem %s4, %s614
        $region72: #{tpu_custom_call.1} parent=59 // pred_fallthru
          _
        // Predicated region
        $region73: #{tpu_custom_call.1} parent=59 // pred_check
          %p616 = pneg %p212
        $region74: #{tpu_custom_call.1} parent=59 // pred_check_branch
          %618 = sbr.rel (%p616) target = $region76
        $region75: #{tpu_custom_call.1} parent=59 // pred_region
          %s619 = sadd.s32 %s31, %s32
          %p620 = scmp.lt.s32.totalorder %s619, 1
          %s621 = scalar_select %p620, %s619, 1
          %s622 = scalar_lea.vmem %s5, %s621
        $region76: #{tpu_custom_call.1} parent=59 // pred_fallthru
          _
      $region60: #{tpu_custom_call.1} parent=5 // pred_fallthru
        _
    $region6: #{tpu_custom_call.1} parent=1 // loop_footer
      %s22 = sadd.s32 1, %s18
    $region7: #{tpu_custom_call.1} parent=1 // loop_footer_branch
      %17 = sbr.rel target = $region3
    $region8: #{tpu_custom_call.1} parent=1 // loop_exit
      _
    %623 = vsyncpa [#allocation3], 1
    %s624 = scalar_lea.sflag [#allocation3], 1
    %625 = vsyncpa %s624, 1
    %626 = vsyncpa [#allocation5], 1
    %s627 = scalar_lea.sflag [#allocation5], 1
    %628 = vsyncpa %s627, 1

</llo_original>
